<compile_context>
chip_gen: v7x
topology: tpu7x:2x2x1
jax: 0.10.0
libtpu: 0.0.40
codegen_flags: <defaults>
</compile_context>

<pallas_src>
import functools

import numpy as np
import jax
import jax.numpy as jnp
from jax import lax
from jax.experimental import pallas as pl
from jax.experimental.pallas import tpu as pltpu

# Plain Python floats (NOT jnp arrays) so the kernels do not capture constants.
LEAKY_SLOPE = 0.2
MASK_BIG = 1e30
DENOM_EPS = 1e-12
FP = 128  # lane-padded feature width used for every intermediate


def _round_up(v, m):
    return ((v + m - 1) // m) * m


# --------------------------- projection kernel -------------------------------
def _proj_kernel(h_ref, w_ref, hp_ref, hp_bf16_ref, src_ref, *, fout):
    """hp_aug = h @ [W | W@a_dst | W@a_src | 0]; also emit a bf16 copy (for the
    aggregation MXU pass) and the hoisted a_src.h' row vector."""
    h = h_ref[...]
    w = w_ref[...]
    if h.shape[1] == 1:
        # F_in == 1 (layer 1): a K=1 matmul is pure MXU fill/drain -> VPU broadcast.
        hp = h * w
    else:
        hp = jnp.dot(h.astype(jnp.bfloat16), w.astype(jnp.bfloat16),
                     preferred_element_type=jnp.float32)
    hp_ref[...] = hp
    hp_bf16_ref[...] = hp.astype(jnp.bfloat16)
    # Hoisted once per layer (not per row tile): src_j = a_src . h'_j as a [1, N] row.
    src_ref[...] = jnp.transpose(hp)[fout + 1:fout + 2, :]


def _project(h, w_aug, fout, n_pad):
    vmem = pl.BlockSpec(memory_space=pltpu.MemorySpace.VMEM)
    return pl.pallas_call(
        functools.partial(_proj_kernel, fout=fout),
        out_shape=(jax.ShapeDtypeStruct((n_pad, FP), jnp.float32),
                   jax.ShapeDtypeStruct((n_pad, FP), jnp.bfloat16),
                   jax.ShapeDtypeStruct((1, n_pad), jnp.float32)),
        in_specs=[vmem, vmem],
        out_specs=(vmem, vmem, vmem),
    )(h, w_aug)


# ---------------------------- attention kernel --------------------------------
def _attn_kernel(adj_ref, hp_bf16_ref, hp_tile_ref, src_ref, b_ref, out_ref, *, fout):
    """One dst-row slab: masked softmax over source nodes, aggregation, bias, ReLU."""
    mask = adj_ref[...].astype(jnp.int32) > 0                   # int8 slab -> bool
    dst = hp_tile_ref[:, fout:fout + 1]                         # [TM, 1]  a_dst . h'_i
    src = src_ref[...]                                          # [1,  N]  a_src . h'_j
    logits = dst + src                                          # [TM, N]
    logits = jnp.maximum(logits, LEAKY_SLOPE * logits)          # LeakyReLU(0.2)
    logits = jnp.where(mask, logits, -MASK_BIG)
    m = jnp.max(logits, axis=-1, keepdims=True)
    e = jnp.where(mask, jnp.exp(logits - m), 0.0)               # exact zeros off-graph
    denom = jnp.maximum(jnp.sum(e, axis=-1, keepdims=True), DENOM_EPS)
    # bf16 MXU aggregation with f32 accumulation; normalise AFTER the matmul.
    agg = jnp.dot(e.astype(jnp.bfloat16), hp_bf16_ref[...],
                  preferred_element_type=jnp.float32)           # [TM, FP]
    out = agg * pl.reciprocal(denom, approx=False) + b_ref[...]
    # Lanes >= fout hold aggregated a_dst/a_src columns -> zero them out.
    col = lax.broadcasted_iota(jnp.int32, (1, out.shape[1]), 1)
    out = jnp.where(col < fout, out, 0.0)
    out_ref[...] = jnp.maximum(out, 0.0)                        # fused ReLU, lane-dense


def _attention(adj_i8, hp_f32, hp_bf16, src_row, bias_p, fout, n_pad, tile_m):
    n_tiles = n_pad // tile_m
    # Rough per-step VMEM footprint: double-buffered int8 adj slab, resident bf16
    # hp, f32/bf16 [TM, N] temporaries, tiled hp/out buffers.  Clamped to stay
    # valid on v7x (64 MiB physical VMEM).
    est = (2 * tile_m * n_pad              # int8 adj slabs (x2 buffers)
           + 2 * n_pad * FP * 2            # resident bf16 hp_aug
           + tile_m * n_pad * 16           # mask/logits/e (f32) + e (bf16) + slack
           + 4 * tile_m * FP * 4)          # hp tile + out tile (x2 buffers)
    vmem_limit = int(min(max(2 * est, 32 * 1024 * 1024), 64 * 1024 * 1024))
    return pl.pallas_call(
        functools.partial(_attn_kernel, fout=fout),
        out_shape=jax.ShapeDtypeStruct((n_pad, FP), jnp.float32),
        grid=(n_tiles,),
        in_specs=[
            pl.BlockSpec((tile_m, n_pad), lambda i: (i, 0)),    # adj dst-row slab (int8, pipelined)
            pl.BlockSpec((n_pad, FP), lambda i: (0, 0)),        # hp_aug bf16, resident
            pl.BlockSpec((tile_m, FP), lambda i: (i, 0)),       # this slab's f32 hp rows (dst term)
            pl.BlockSpec((1, n_pad), lambda i: (0, 0)),         # a_src row, resident
            pl.BlockSpec((1, FP), lambda i: (0, 0)),            # bias, resident
        ],
        out_specs=pl.BlockSpec((tile_m, FP), lambda i: (i, 0)),
        compiler_params=pltpu.CompilerParams(
            dimension_semantics=("parallel",),
            vmem_limit_bytes=vmem_limit),
    )(adj_i8, hp_bf16, hp_f32, src_row, bias_p)


# ---------------------------- pool + fc kernel --------------------------------
def _poolfc_kernel(pool_ref, h_ref, wfc_ref, bfc_ref, out_ref):
    pooled = jnp.dot(pool_ref[...].astype(jnp.bfloat16),
                     h_ref[...].astype(jnp.bfloat16),
                     preferred_element_type=jnp.float32)        # [Gp, FP]
    out_ref[...] = (jnp.dot(pooled, wfc_ref[...],
                            preferred_element_type=jnp.float32)
                    + bfc_ref[...])                             # [Gp, OUTp] lane-dense


def _pool_fc(pool_p, h2, wfc_p, bfc_p, g_pad, out_pad):
    vmem = pl.BlockSpec(memory_space=pltpu.MemorySpace.VMEM)
    return pl.pallas_call(
        _poolfc_kernel,
        out_shape=jax.ShapeDtypeStruct((g_pad, out_pad), jnp.float32),
        in_specs=[vmem] * 4,
        out_specs=vmem,
    )(pool_p, h2, wfc_p, bfc_p)


# ------------------------------- forward pass ---------------------------------
def gnn_forward(x, adj, pool_mat, params):
    """x: [N, Fin], adj[i, j] = 1 if edge j -> i (incl. self loops), pool: [G, N].

    Returns [G, OUT]."""
    n, f_in = x.shape
    g = pool_mat.shape[0]
    h1_dim = params["w1"].shape[1]
    h2_dim = params["w2"].shape[1]
    out_dim = params["wfc"].shape[1]

    n_pad = _round_up(n, 128)
    g_pad = _round_up(g, 8)
    out_pad = _round_up(out_dim, FP)
    tile_m = 256 if n_pad % 256 == 0 else 128

    def aug(w, a_dst, a_src, fin_pad):
        fin, fout = w.shape
        wa = jnp.concatenate([w, w @ a_dst, w @ a_src], axis=1)      # [fin, fout+2]
        return jnp.pad(wa, ((0, fin_pad - fin), (0, FP - (fout + 2))))

    w1_aug = aug(params["w1"], params["ad1"], params["as1"], f_in)    # [Fin, 128]
    w2_aug = aug(params["w2"], params["ad2"], params["as2"], FP)      # [128, 128]
    b1_p = jnp.pad(params["b1"], ((0, 0), (0, FP - h1_dim)))
    b2_p = jnp.pad(params["b2"], ((0, 0), (0, FP - h2_dim)))
    wfc_p = jnp.pad(params["wfc"], ((0, FP - h2_dim), (0, out_pad - out_dim)))
    bfc_p = jnp.pad(params["bfc"], ((0, 0), (0, out_pad - out_dim)))

    x_p = jnp.pad(x, ((0, n_pad - n), (0, 0)))
    # int8 0/1 adjacency; padded rows/cols stay all-zero (no self-loops are added to
    # padded rows), so padded nodes can never leak into real rows or pooled outputs.
    adj_i8 = jnp.pad((adj > 0).astype(jnp.int8),
                     ((0, n_pad - n), (0, n_pad - n)))
    pool_p = jnp.pad(pool_mat, ((0, g_pad - g), (0, n_pad - n)))

    # layer 1: GATConv(1 -> 32) + ReLU
    hp1, hp1_bf16, src1 = _project(x_p, w1_aug, h1_dim, n_pad)
    h1_act = _attention(adj_i8, hp1, hp1_bf16, src1, b1_p, h1_dim, n_pad, tile_m)
    # layer 2: GATConv(32 -> 64) + ReLU
    hp2, hp2_bf16, src2 = _project(h1_act, w2_aug, h2_dim, n_pad)
    h2_act = _attention(adj_i8, hp2, hp2_bf16, src2, b2_p, h2_dim, n_pad, tile_m)
    # global_mean_pool + Linear(64 -> 2)
    out = _pool_fc(pool_p, h2_act, wfc_p, bfc_p, g_pad, out_pad)
    return out[:g, :out_dim]


# ---------------- pure-JAX reference (same dense formulation, f32) ------------
def _gat_ref(h, adj, w, a_src, a_dst, bias):
    hp = h @ w
    dst = hp @ a_dst                       # [N, 1]
    src = (hp @ a_src).T                   # [1, N]
    logits = dst + src
    logits = jnp.where(logits > 0, logits, LEAKY_SLOPE * logits)
    mask = adj > 0
    logits = jnp.where(mask, logits, -MASK_BIG)
    m = jnp.max(logits, axis=-1, keepdims=True)
    e = jnp.where(mask, jnp.exp(logits - m), 0.0)
    attn = e / jnp.maximum(jnp.sum(e, axis=-1, keepdims=True), DENOM_EPS)
    return attn @ hp + bias


def gnn_ref(x, adj, pool_mat, p):
    a1 = jnp.maximum(_gat_ref(x, adj, p["w1"], p["as1"], p["ad1"], p["b1"]), 0.0)
    a2 = jnp.maximum(_gat_ref(a1, adj, p["w2"], p["as2"], p["ad2"], p["b2"]), 0.0)
    return (pool_mat @ a2) @ p["wfc"] + p["bfc"]


if __name__ == "__main__":
    N = 16          # nodes (2 graphs of 8)
    G = 2           # graphs in the batch
    F_IN, H1, H2, OUT = 1, 32, 64, 2

    key = jax.random.PRNGKey(0)
    ks = jax.random.split(key, 11)

    params = {
        "w1":  0.5 * jax.random.normal(ks[0], (F_IN, H1), jnp.float32),
        "as1": 0.3 * jax.random.normal(ks[1], (H1, 1), jnp.float32),
        "ad1": 0.3 * jax.random.normal(ks[2], (H1, 1), jnp.float32),
        "b1":  0.1 * jax.random.normal(ks[3], (1, H1), jnp.float32),
        "w2":  0.2 * jax.random.normal(ks[4], (H1, H2), jnp.float32),
        "as2": 0.2 * jax.random.normal(ks[5], (H2, 1), jnp.float32),
        "ad2": 0.2 * jax.random.normal(ks[6], (H2, 1), jnp.float32),
        "b2":  0.1 * jax.random.normal(ks[7], (1, H2), jnp.float32),
        "wfc": 0.2 * jax.random.normal(ks[8], (H2, OUT), jnp.float32),
        "bfc": 0.1 * jax.random.normal(ks[9], (1, OUT), jnp.float32),
    }

    # node features x: [N, 1]
    x = jax.random.normal(ks[10], (N, F_IN), jnp.float32)

    # edge_index: [2, E] — bidirectional ring inside each graph of 8 nodes
    src_list, dst_list = [], []
    for gi in range(G):
        base = gi * (N // G)
        n_g = N // G
        for i in range(n_g):
            a, b = base + i, base + (i + 1) % n_g
            src_list += [a, b]
            dst_list += [b, a]
    edge_index = np.array([src_list, dst_list], dtype=np.int32)

    # dense adjacency adj[dst, src] = 1 + self-loops (PyG GATConv default)
    adj_np = np.zeros((N, N), dtype=np.float32)
    adj_np[edge_index[1], edge_index[0]] = 1.0
    np.fill_diagonal(adj_np, 1.0)
    adj = jnp.asarray(adj_np)

    # batch assignment + mean-pool matrix [G, N]
    batch = np.repeat(np.arange(G), N // G)
    pool_np = np.zeros((G, N), dtype=np.float32)
    for gi in range(G):
        idx = np.where(batch == gi)[0]
        pool_np[gi, idx] = 1.0 / len(idx)
    pool_mat = jnp.asarray(pool_np)

    out = gnn_forward(x, adj, pool_mat, params)
    out = jax.block_until_ready(out)

    ref = gnn_ref(x, adj, pool_mat, params)
    assert out.shape == (G, OUT)
    # tolerance accounts for bf16 MXU operands (f32 accumulation) in the
    # aggregation / projection / pooling matmuls vs. the pure-f32 reference.
    assert np.allclose(np.asarray(out), np.asarray(ref), rtol=2e-2, atol=2e-2), (
        np.asarray(out), np.asarray(ref))

    print("KERNEL_OK")
</pallas_src>

<mosaic_0001>
module attributes {stable_mosaic.version = 11 : i64} {
  func.func @_proj_kernel(%arg0: memref<128x1xf32, #tpu.memory_space<vmem>>, %arg1: memref<1x128xf32, #tpu.memory_space<vmem>>, %arg2: memref<128x128xf32, #tpu.memory_space<vmem>>, %arg3: memref<128x128xbf16, #tpu.memory_space<vmem>>, %arg4: memref<1x128xf32, #tpu.memory_space<vmem>>) attributes {dimension_semantics = [], scalar_prefetch = 0 : i64, scratch_operands = 0 : i64, tpu.core_type = #tpu.core_type<tc>} {
    %c0 = arith.constant 0 : index
    %c0_0 = arith.constant 0 : index
    %0 = vector.load %arg0[%c0, %c0_0] : memref<128x1xf32, #tpu.memory_space<vmem>>, vector<128x1xf32>
    %c0_1 = arith.constant 0 : index
    %c0_2 = arith.constant 0 : index
    %1 = vector.load %arg1[%c0_1, %c0_2] : memref<1x128xf32, #tpu.memory_space<vmem>>, vector<1x128xf32>
    %2 = vector.broadcast %0 : vector<128x1xf32> to vector<128x128xf32>
    %3 = vector.broadcast %1 : vector<1x128xf32> to vector<128x128xf32>
    %4 = arith.mulf %2, %3 : vector<128x128xf32>
    %c0_3 = arith.constant 0 : index
    %c0_4 = arith.constant 0 : index
    %5 = vector.load %arg2[%c0_3, %c0_4] : memref<128x128xf32, #tpu.memory_space<vmem>>, vector<128x128xf32>
    tpu.vector_store %arg2[%c0_3, %c0_4], %4 {strides = array<i32>} : memref<128x128xf32, #tpu.memory_space<vmem>>, vector<128x128xf32>,
    %6 = arith.truncf %4 : vector<128x128xf32> to vector<128x128xbf16>
    %c0_5 = arith.constant 0 : index
    %c0_6 = arith.constant 0 : index
    %7 = vector.load %arg3[%c0_5, %c0_6] : memref<128x128xbf16, #tpu.memory_space<vmem>>, vector<128x128xbf16>
    tpu.vector_store %arg3[%c0_5, %c0_6], %6 {strides = array<i32>} : memref<128x128xbf16, #tpu.memory_space<vmem>>, vector<128x128xbf16>,
    %8 = tpu.transpose %4, [1, 0] : vector<128x128xf32> -> vector<128x128xf32>
    %9 = vector.extract_strided_slice %8 {offsets = [33, 0], sizes = [1, 128], strides = [1, 1]} : vector<128x128xf32> to vector<1x128xf32>
    %c0_7 = arith.constant 0 : index
    %c0_8 = arith.constant 0 : index
    %10 = vector.load %arg4[%c0_7, %c0_8] : memref<1x128xf32, #tpu.memory_space<vmem>>, vector<1x128xf32>
    tpu.vector_store %arg4[%c0_7, %c0_8], %9 {strides = array<i32>} : memref<1x128xf32, #tpu.memory_space<vmem>>, vector<1x128xf32>,
    return
  }
}

</mosaic_0001>

<llo_original>
// kernel: tpu_custom_call.1
$region0: #{tpu_custom_call.1}
  #allocation0 [shape = 'u32[]', space=smem, size = 0x4, offset = 0x4, fixed_abs, tag = 'smem constant byte address 0x4 - core index']
  #allocation1 [shape = 'u32[144,128]{1,0:T(1,128)}', space=vmem, size = 0x12000, scoped, tag = 'internal scratch']
  %s0 = inlined_call_operand.vmem [shape: f32[128,1], index: 0, kind: input, shape index: {}]
  %s1 = inlined_call_operand.vmem [shape: f32[1,128], index: 1, kind: input, shape index: {}]
  %s2 = inlined_call_operand.hbm [shape: f32[128,128], index: 2, kind: output, shape index: {0}]
  %s3 = inlined_call_operand.hbm [shape: bf16[128,128], index: 3, kind: output, shape index: {1}]
  %s4 = inlined_call_operand.hbm [shape: f32[1,128], index: 4, kind: output, shape index: {2}]
  %5 = xla_tuple %s2, %s3, %s4
  %s6 = sld [smem:[#allocation0]]
  $region34: #{tpu_custom_call.1} parent=0
    _
  %s8 = ssub.s32 1, %s6
  %s9 = scalar_select 0, %s8, %s6
  $region1: #{tpu_custom_call.1} parent=0
    #allocation2 [shape = 'u8[65536]{0}', space=vmem, size = 0x10000, scoped, tag = 'output window, operand 0, single buffered']
    #allocation3 [shape = 's32[1]{0}', space=sflag, size = 0x4, scoped, tag = 'scoped memory for tpu_custom_call.1']
    #allocation4 [shape = 'u8[32768]{0}', space=vmem, size = 0x8000, scoped, tag = 'output window, operand 1, single buffered']
    #allocation5 [shape = 's32[1]{0}', space=sflag, size = 0x4, scoped, tag = 'scoped memory for tpu_custom_call.1']
    #allocation6 [shape = 'u8[512]{0}', space=vmem, size = 0x400, scoped, tag = 'output window, operand 2, single buffered']
    %10 = vsyncpa [#allocation3], 0
    %11 = vsyncpa [#allocation5], 0
    // Predicated region
    $region2: #{tpu_custom_call.1} parent=1 // pred_check
      _
    $region3: #{tpu_custom_call.1} parent=1 // pred_check_branch
      %13 = sbr.rel (0) target = $region5
    $region4: #{tpu_custom_call.1} parent=1 // pred_region
      _
    $region5: #{tpu_custom_call.1} parent=1 // pred_fallthru
      _
    // Predicated region
    $region6: #{tpu_custom_call.1} parent=1 // pred_check
      _
    $region7: #{tpu_custom_call.1} parent=1 // pred_check_branch
      %15 = sbr.rel (0) target = $region9
    $region8: #{tpu_custom_call.1} parent=1 // pred_region
      _
    $region9: #{tpu_custom_call.1} parent=1 // pred_fallthru
      _
    %v16 = vld [vmem:[%s0] sm:$0xff]
    %v17 = vld [vmem:[%s0 + $0x8] sm:$0xff]
    %v18 = vld [vmem:[%s0 + $0x10] sm:$0xff]
    %v19 = vld [vmem:[%s0 + $0x18] sm:$0xff]
    %v20 = vld [vmem:[%s0 + $0x20] sm:$0xff]
    %v21 = vld [vmem:[%s0 + $0x28] sm:$0xff]
    %v22 = vld [vmem:[%s0 + $0x30] sm:$0xff]
    %v23 = vld [vmem:[%s0 + $0x38] sm:$0xff]
    %v24 = vld [vmem:[%s0 + $0x40] sm:$0xff]
    %v25 = vld [vmem:[%s0 + $0x48] sm:$0xff]
    %v26 = vld [vmem:[%s0 + $0x50] sm:$0xff]
    %v27 = vld [vmem:[%s0 + $0x58] sm:$0xff]
    %v28 = vld [vmem:[%s0 + $0x60] sm:$0xff]
    %v29 = vld [vmem:[%s0 + $0x68] sm:$0xff]
    %v30 = vld [vmem:[%s0 + $0x70] sm:$0xff]
    %v31 = vld [vmem:[%s0 + $0x78] sm:$0xff]
    %v32 = vld [vmem:[%s1] sm:$0x1]
    %34 = vset.pattern.permute.xlu0 0
    %35 = vperm.xlu0 %34, %v16
    %v36 = vpop.permute.xlu0 %35
    %39 = vset.pattern.permute.xlu0 0
    %40 = vperm.xlu0 %39, %v17
    %v41 = vpop.permute.xlu0 %40
    %44 = vset.pattern.permute.xlu0 0
    %45 = vperm.xlu0 %44, %v18
    %v46 = vpop.permute.xlu0 %45
    %49 = vset.pattern.permute.xlu0 0
    %50 = vperm.xlu0 %49, %v19
    %v51 = vpop.permute.xlu0 %50
    %54 = vset.pattern.permute.xlu0 0
    %55 = vperm.xlu0 %54, %v20
    %v56 = vpop.permute.xlu0 %55
    %59 = vset.pattern.permute.xlu0 0
    %60 = vperm.xlu0 %59, %v21
    %v61 = vpop.permute.xlu0 %60
    %64 = vset.pattern.permute.xlu0 0
    %65 = vperm.xlu0 %64, %v22
    %v66 = vpop.permute.xlu0 %65
    %69 = vset.pattern.permute.xlu0 0
    %70 = vperm.xlu0 %69, %v23
    %v71 = vpop.permute.xlu0 %70
    %74 = vset.pattern.permute.xlu0 0
    %75 = vperm.xlu0 %74, %v24
    %v76 = vpop.permute.xlu0 %75
    %79 = vset.pattern.permute.xlu0 0
    %80 = vperm.xlu0 %79, %v25
    %v81 = vpop.permute.xlu0 %80
    %84 = vset.pattern.permute.xlu0 0
    %85 = vperm.xlu0 %84, %v26
    %v86 = vpop.permute.xlu0 %85
    %89 = vset.pattern.permute.xlu0 0
    %90 = vperm.xlu0 %89, %v27
    %v91 = vpop.permute.xlu0 %90
    %94 = vset.pattern.permute.xlu0 0
    %95 = vperm.xlu0 %94, %v28
    %v96 = vpop.permute.xlu0 %95
    %99 = vset.pattern.permute.xlu0 0
    %100 = vperm.xlu0 %99, %v29
    %v101 = vpop.permute.xlu0 %100
    %104 = vset.pattern.permute.xlu0 0
    %105 = vperm.xlu0 %104, %v30
    %v106 = vpop.permute.xlu0 %105
    %109 = vset.pattern.permute.xlu0 0
    %110 = vperm.xlu0 %109, %v31
    %v111 = vpop.permute.xlu0 %110
    %v114 = vlaneseq
    %v115 = vshrl.u32 %v114, 7
    %v116 = vsub.s32 0, %v115
    %v117 = vrot.slane %v32, %v116
    %v119 = vmul.f32 %v36, %v117
    %v120 = vmul.f32 %v41, %v117
    %v121 = vmul.f32 %v46, %v117
    %v122 = vmul.f32 %v51, %v117
    %v123 = vmul.f32 %v56, %v117
    %v124 = vmul.f32 %v61, %v117
    %v125 = vmul.f32 %v66, %v117
    %v126 = vmul.f32 %v71, %v117
    %v127 = vmul.f32 %v76, %v117
    %v128 = vmul.f32 %v81, %v117
    %v129 = vmul.f32 %v86, %v117
    %v130 = vmul.f32 %v91, %v117
    %v131 = vmul.f32 %v96, %v117
    %v132 = vmul.f32 %v101, %v117
    %v133 = vmul.f32 %v106, %v117
    %v134 = vmul.f32 %v111, %v117
    %135 = vst [vmem:[#allocation2] sm:$0xff] %v119
    %136 = vst [vmem:[#allocation2 + $0x8] sm:$0xff] %v120
    %137 = vst [vmem:[#allocation2 + $0x10] sm:$0xff] %v121
    %138 = vst [vmem:[#allocation2 + $0x18] sm:$0xff] %v122
    %139 = vst [vmem:[#allocation2 + $0x20] sm:$0xff] %v123
    %140 = vst [vmem:[#allocation2 + $0x28] sm:$0xff] %v124
    %141 = vst [vmem:[#allocation2 + $0x30] sm:$0xff] %v125
    %142 = vst [vmem:[#allocation2 + $0x38] sm:$0xff] %v126
    %143 = vst [vmem:[#allocation2 + $0x40] sm:$0xff] %v127
    %144 = vst [vmem:[#allocation2 + $0x48] sm:$0xff] %v128
    %145 = vst [vmem:[#allocation2 + $0x50] sm:$0xff] %v129
    %146 = vst [vmem:[#allocation2 + $0x58] sm:$0xff] %v130
    %147 = vst [vmem:[#allocation2 + $0x60] sm:$0xff] %v131
    %148 = vst [vmem:[#allocation2 + $0x68] sm:$0xff] %v132
    %149 = vst [vmem:[#allocation2 + $0x70] sm:$0xff] %v133
    %150 = vst [vmem:[#allocation2 + $0x78] sm:$0xff] %v134
    %v151 = vpack.c.bf16 %v120, %v119
    %v152 = vpack.c.bf16 %v122, %v121
    %v153 = vpack.c.bf16 %v124, %v123
    %v154 = vpack.c.bf16 %v126, %v125
    %v155 = vpack.c.bf16 %v128, %v127
    %v156 = vpack.c.bf16 %v130, %v129
    %v157 = vpack.c.bf16 %v132, %v131
    %v158 = vpack.c.bf16 %v134, %v133
    %v167 = vunpack.c.l.b16 %v151
    %v168 = vunpack.c.h.b16 %v151
    %v169 = vunpack.c.l.b16 %v152
    %v170 = vunpack.c.h.b16 %v152
    %v171 = vunpack.c.l.b16 %v153
    %v172 = vunpack.c.h.b16 %v153
    %v173 = vunpack.c.l.b16 %v154
    %v174 = vunpack.c.h.b16 %v154
    %v175 = vunpack.c.l.b16 %v155
    %v176 = vunpack.c.h.b16 %v155
    %v177 = vunpack.c.l.b16 %v156
    %v178 = vunpack.c.h.b16 %v156
    %v179 = vunpack.c.l.b16 %v157
    %v180 = vunpack.c.h.b16 %v157
    %v181 = vunpack.c.l.b16 %v158
    %v182 = vunpack.c.h.b16 %v158
    %v183 = vpack.c.b16 %v167, %v167
    %v184 = vpack.c.b16 %v168, %v168
    %v185 = vpack.c.b16 %v169, %v169
    %v186 = vpack.c.b16 %v170, %v170
    %v187 = vpack.c.b16 %v171, %v171
    %v188 = vpack.c.b16 %v172, %v172
    %v189 = vpack.c.b16 %v173, %v173
    %v190 = vpack.c.b16 %v174, %v174
    %v191 = vpack.c.b16 %v175, %v175
    %v192 = vpack.c.b16 %v176, %v176
    %v193 = vpack.c.b16 %v177, %v177
    %v194 = vpack.c.b16 %v178, %v178
    %v195 = vpack.c.b16 %v179, %v179
    %v196 = vpack.c.b16 %v180, %v180
    %v197 = vpack.c.b16 %v181, %v181
    %v198 = vpack.c.b16 %v182, %v182
    %215 = vst [vmem:[#allocation4] sm:$0xf] %v183
    %216 = vst [vmem:[#allocation4 + $0x4] sm:$0xf] %v184
    %217 = vst [vmem:[#allocation4 + $0x8] sm:$0xf] %v185
    %218 = vst [vmem:[#allocation4 + $0xc] sm:$0xf] %v186
    %219 = vst [vmem:[#allocation4 + $0x10] sm:$0xf] %v187
    %220 = vst [vmem:[#allocation4 + $0x14] sm:$0xf] %v188
    %221 = vst [vmem:[#allocation4 + $0x18] sm:$0xf] %v189
    %222 = vst [vmem:[#allocation4 + $0x1c] sm:$0xf] %v190
    %223 = vst [vmem:[#allocation4 + $0x20] sm:$0xf] %v191
    %224 = vst [vmem:[#allocation4 + $0x24] sm:$0xf] %v192
    %225 = vst [vmem:[#allocation4 + $0x28] sm:$0xf] %v193
    %226 = vst [vmem:[#allocation4 + $0x2c] sm:$0xf] %v194
    %227 = vst [vmem:[#allocation4 + $0x30] sm:$0xf] %v195
    %228 = vst [vmem:[#allocation4 + $0x34] sm:$0xf] %v196
    %229 = vst [vmem:[#allocation4 + $0x38] sm:$0xf] %v197
    %230 = vst [vmem:[#allocation4 + $0x3c] sm:$0xf] %v198
    %231 = vxpose.xlu0.b32.start [1/16] %v119, 128
    %232 = vxpose.xlu0.b32.cont [2/16] %v120, 128
    %233 = vxpose.xlu0.b32.cont [3/16] %v121, 128
    %234 = vxpose.xlu0.b32.cont [4/16] %v122, 128
    %235 = vxpose.xlu0.b32.cont [5/16] %v123, 128
    %236 = vxpose.xlu0.b32.cont [6/16] %v124, 128
    %237 = vxpose.xlu0.b32.cont [7/16] %v125, 128
    %238 = vxpose.xlu0.b32.cont [8/16] %v126, 128
    %239 = vxpose.xlu0.b32.cont [9/16] %v127, 128
    %240 = vxpose.xlu0.b32.cont [10/16] %v128, 128
    %241 = vxpose.xlu0.b32.cont [11/16] %v129, 128
    %242 = vxpose.xlu0.b32.cont [12/16] %v130, 128
    %243 = vxpose.xlu0.b32.cont [13/16] %v131, 128
    %244 = vxpose.xlu0.b32.cont [14/16] %v132, 128
    %245 = vxpose.xlu0.b32.cont [15/16] %v133, 128
    %246 = vxpose.xlu0.b32.end [16/16] %v134, 128
    %v247 = vpop.trf.xlu0
    %v248 = vpop.trf.xlu0
    %v249 = vpop.trf.xlu0
    %v250 = vpop.trf.xlu0
    %v251 = vpop.trf.xlu0
    %v252 = vpop.trf.xlu0
    %v253 = vpop.trf.xlu0
    %v254 = vpop.trf.xlu0
    %v255 = vpop.trf.xlu0
    %v256 = vpop.trf.xlu0
    %v257 = vpop.trf.xlu0
    %v258 = vpop.trf.xlu0
    %v259 = vpop.trf.xlu0
    %v260 = vpop.trf.xlu0
    %v261 = vpop.trf.xlu0
    %v262 = vpop.trf.xlu0
    %263 = vst [vmem:[#allocation6 - $0x1] sm:$0x2] %v251
    // Predicated region
    $region10: #{tpu_custom_call.1} parent=1 // pred_check
      _
    $region11: #{tpu_custom_call.1} parent=1 // pred_check_branch
      %265 = sbr.rel (0) target = $region13
    $region12: #{tpu_custom_call.1} parent=1 // pred_region
      %s267 = ssub.s32 2048, 2048
      %268 = vsyncadd [#allocation3], %s267
      %s269 = sshll.u32 [#allocation2], 4
      %s270 = int_to_ptr.vmem [resolvable:$true] %s269
      %275 = dma.vmem_to_hbm [thread:$0]  %s270, 2048, %s2, [#allocation3], 128, 128, 8
    $region13: #{tpu_custom_call.1} parent=1 // pred_fallthru
      _
    // Predicated region
    $region14: #{tpu_custom_call.1} parent=1 // pred_check
      _
    $region15: #{tpu_custom_call.1} parent=1 // pred_check_branch
      %277 = sbr.rel (0) target = $region17
    $region16: #{tpu_custom_call.1} parent=1 // pred_region
      %s279 = ssub.s32 1024, 1024
      %280 = vsyncadd [#allocation5], %s279
      %s281 = sshll.u32 [#allocation4], 4
      %s282 = int_to_ptr.vmem [resolvable:$true] %s281
      %287 = dma.vmem_to_hbm [thread:$0]  %s282, 1024, %s3, [#allocation5], 64, 64, 4
    $region17: #{tpu_custom_call.1} parent=1 // pred_fallthru
      _
    // Predicated region
    $region18: #{tpu_custom_call.1} parent=1 // pred_check
      _
    $region19: #{tpu_custom_call.1} parent=1 // pred_check_branch
      %289 = sbr.rel (0) target = $region21
    $region20: #{tpu_custom_call.1} parent=1 // pred_region
      %s291 = ssub.s32 16, 16
      %292 = vsyncadd [#allocation5], %s291
      %s294 = sshll.u32 [#allocation6], 4
      %s295 = int_to_ptr.vmem [resolvable:$true] %s294
      %297 = dma.vmem_to_hbm [thread:$0]  %s295, 16, %s4, [#allocation5]
    $region21: #{tpu_custom_call.1} parent=1 // pred_fallthru
      _
    // Predicated region
    $region22: #{tpu_custom_call.1} parent=1 // pred_check
      _
    $region23: #{tpu_custom_call.1} parent=1 // pred_check_branch
      %299 = sbr.rel (0) target = $region25
    $region24: #{tpu_custom_call.1} parent=1 // pred_region
      %300 = dma.done [#allocation3], 2048
    $region25: #{tpu_custom_call.1} parent=1 // pred_fallthru
      _
    // Predicated region
    $region26: #{tpu_custom_call.1} parent=1 // pred_check
      _
    $region27: #{tpu_custom_call.1} parent=1 // pred_check_branch
      %302 = sbr.rel (0) target = $region29
    $region28: #{tpu_custom_call.1} parent=1 // pred_region
      %303 = dma.done [#allocation5], 1024
    $region29: #{tpu_custom_call.1} parent=1 // pred_fallthru
      _
    // Predicated region
    $region30: #{tpu_custom_call.1} parent=1 // pred_check
      _
    $region31: #{tpu_custom_call.1} parent=1 // pred_check_branch
      %305 = sbr.rel (0) target = $region33
    $region32: #{tpu_custom_call.1} parent=1 // pred_region
      %306 = dma.done [#allocation5], 16
    $region33: #{tpu_custom_call.1} parent=1 // pred_fallthru
      _
    %307 = vsyncpa [#allocation3], 1
    %308 = vsyncpa [#allocation5], 1

</llo_original>
